<compile_context>
chip_gen: v7x
topology: tpu7x:2x2x1
jax: 0.10.0
libtpu: 0.0.40
codegen_flags: <defaults>
</compile_context>

<pallas_src>
import jax
import jax.numpy as jnp
from jax.experimental import pallas as pl
from jax.experimental.pallas import tpu as pltpu

_LANE = 128                       # TPU lane width (last dim granularity)
_BLOCK_BYTES = 2 * 1024 * 1024    # ~2 MiB per in/out buffer per grid step
_MIN_KERNEL_BYTES = 256 * 1024    # below this, plain jnp.tanh is faster
_TARGET_MIN_BLOCKS = 4            # keep >=4 grid steps (v7x megacore)
_VMEM_LIMIT = 32 * 1024 * 1024    # explicit scoped-VMEM limit (safe on all chips)


def _tanh_kernel(x_ref, o_ref):
    # Whole-tile elementwise tanh: EUP transcendental + full-vreg load/store.
    o_ref[...] = jnp.tanh(x_ref[...])


def _min_sublanes(itemsize):
    # Dtype-aware minimum second-to-last tiling: f32 -> 8, bf16/f16 -> 16,
    # int8/fp8 -> 32 (sub-32-bit dtypes pack along sublanes).
    return 8 * max(4 // int(itemsize), 1)


def _tanh_2d(x2d):
    """Run the Pallas kernel over a lane-dense (rows, cols) slab."""
    rows, cols = x2d.shape
    itemsize = jnp.dtype(x2d.dtype).itemsize
    min_sub = _min_sublanes(itemsize)

    # Rows per block from the byte budget (multiple of the sublane granule).
    budget_rows = max((_BLOCK_BYTES // (cols * itemsize)) // min_sub * min_sub,
                      min_sub)
    # Keep at least ~4 blocks so the "parallel" axis can feed both v7x TCs.
    quarter = pl.cdiv(rows, _TARGET_MIN_BLOCKS)
    quarter = max((quarter + min_sub - 1) // min_sub * min_sub, min_sub)

    block_rows = min(budget_rows, quarter)
    if block_rows >= rows:
        block_rows = rows          # single block spanning the full dim (legal)

    grid = (pl.cdiv(rows, block_rows),)

    cost = pl.CostEstimate(
        flops=0,
        transcendentals=rows * cols,
        bytes_accessed=2 * rows * cols * itemsize,
    )

    return pl.pallas_call(
        _tanh_kernel,
        out_shape=jax.ShapeDtypeStruct((rows, cols), x2d.dtype),
        grid_spec=pl.GridSpec(
            grid=grid,
            in_specs=[pl.BlockSpec((block_rows, cols), lambda i: (i, 0))],
            out_specs=pl.BlockSpec((block_rows, cols), lambda i: (i, 0)),
        ),
        compiler_params=pltpu.CompilerParams(
            dimension_semantics=("parallel",),
            vmem_limit_bytes=_VMEM_LIMIT,
        ),
        cost_estimate=cost,
    )(x2d)


def tanh_forward(x, *, min_kernel_bytes=_MIN_KERNEL_BYTES):
    """Elementwise tanh (nn.Tanh forward) via a Pallas TPU kernel."""
    # nn.Tanh is float-only in practice; integer inputs would promote and
    # change the output dtype -> handle them (and empty tensors) in plain JAX.
    if not jnp.issubdtype(x.dtype, jnp.floating):
        return jnp.tanh(x)

    orig_shape = x.shape
    n = int(x.size)
    itemsize = jnp.dtype(x.dtype).itemsize
    if n == 0 or n * itemsize < min_kernel_bytes:
        # Tiny tensors: launch cost dominates; XLA's fused tanh is faster.
        return jnp.tanh(x)

    min_sub = _min_sublanes(itemsize)
    tile_elems = min_sub * _LANE

    flat = jnp.ravel(x)                        # contiguous -> free reshape
    m = (n // tile_elems) * tile_elems         # largest full-tile prefix
    if m == 0:
        return jnp.tanh(x)

    # Widest lane-dense last dim (multiple of 128) that keeps rows a multiple
    # of the sublane granule -> fewer, longer unmasked store rows.
    cols = _LANE
    for c in (1024, 512, 256):
        if m % (min_sub * c) == 0:
            cols = c
            break

    if m == n:
        # No tail: zero-copy reshape in, zero-copy reshape out.
        return _tanh_2d(flat.reshape(n // cols, cols)).reshape(orig_shape)

    # Main slab through the kernel; tail (< one (min_sub,128) tile) in plain
    # JAX.  No full-tensor jnp.pad / post-kernel slice.
    main = _tanh_2d(flat[:m].reshape(m // cols, cols)).reshape(-1)
    tail = jnp.tanh(flat[m:])
    return jnp.concatenate([main, tail]).reshape(orig_shape)


if __name__ == "__main__":
    key = jax.random.PRNGKey(0)

    # Primary example shape (matches a generic Tanh forward).  Force the
    # Pallas path even at this small size (default wrapper would short-circuit
    # tiny tensors to plain jnp.tanh for speed).
    x = jax.random.normal(key, (2, 4, 16, 16), dtype=jnp.float32)
    out = jax.block_until_ready(tanh_forward(x, min_kernel_bytes=0))
    ref = jnp.tanh(x)
    assert out.shape == x.shape and out.dtype == x.dtype
    assert bool(jnp.allclose(out, ref, atol=1e-6, rtol=1e-6)), "tanh mismatch"

    # Default path (tiny tensor -> fallback) must also be correct.
    out_d = jax.block_until_ready(tanh_forward(x))
    assert bool(jnp.allclose(out_d, ref, atol=1e-6, rtol=1e-6))

    # Odd trailing size: exercises the main-slab + tail split (no padding).
    x2 = jax.random.normal(jax.random.PRNGKey(0), (3, 5, 903), dtype=jnp.float32)
    out2 = jax.block_until_ready(tanh_forward(x2, min_kernel_bytes=0))
    assert bool(jnp.allclose(out2, jnp.tanh(x2), atol=1e-6, rtol=1e-6))

    # bf16: exercises dtype-aware sublane rounding (16) and wider lane slab.
    x3 = jax.random.normal(jax.random.PRNGKey(0), (4, 8, 256), dtype=jnp.bfloat16)
    out3 = jax.block_until_ready(tanh_forward(x3, min_kernel_bytes=0))
    assert out3.dtype == jnp.bfloat16
    assert bool(jnp.allclose(out3.astype(jnp.float32),
                             jnp.tanh(x3.astype(jnp.float32)),
                             atol=1e-2, rtol=1e-2))

    print("KERNEL_OK")
</pallas_src>

<mosaic_0001>
module attributes {stable_mosaic.version = 11 : i64} {
  func.func @_tanh_kernel(%arg0: i32, %arg1: memref<8x256xf32, #tpu.memory_space<vmem>>, %arg2: memref<8x256xf32, #tpu.memory_space<vmem>>) attributes {dimension_semantics = [#tpu.dimension_semantics<parallel>], iteration_bounds = array<i64: 1>, scalar_prefetch = 0 : i64, scratch_operands = 0 : i64, tpu.core_type = #tpu.core_type<tc>, window_params = [{transform_indices = @transform_0, window_bounds = array<i64: 8, 256>}, {transform_indices = @transform_1, window_bounds = array<i64: 8, 256>}]} {
    %c0 = arith.constant 0 : index
    %c0_0 = arith.constant 0 : index
    %0 = vector.load %arg1[%c0, %c0_0] : memref<8x256xf32, #tpu.memory_space<vmem>>, vector<8x256xf32>
    %1 = math.tanh %0 : vector<8x256xf32>
    %c0_1 = arith.constant 0 : index
    %c0_2 = arith.constant 0 : index
    %2 = vector.load %arg2[%c0_1, %c0_2] : memref<8x256xf32, #tpu.memory_space<vmem>>, vector<8x256xf32>
    tpu.vector_store %arg2[%c0_1, %c0_2], %1 {strides = array<i32>} : memref<8x256xf32, #tpu.memory_space<vmem>>, vector<8x256xf32>,
    return
  }
  func.func @transform_0(%arg0: i32) -> (i32, i32) {
    %c0_i32 = arith.constant 0 : i32
    %c0_i32_0 = arith.constant 0 : i32
    return %arg0, %c0_i32 : i32, i32
  }
  func.func @transform_1(%arg0: i32) -> (i32, i32) {
    %c0_i32 = arith.constant 0 : i32
    %c0_i32_0 = arith.constant 0 : i32
    return %arg0, %c0_i32 : i32, i32
  }
}

</mosaic_0001>

<llo_original>
// kernel: tpu_custom_call.1
$region0: #{tpu_custom_call.1}
  #allocation0 [shape = 'u32[]', space=smem, size = 0x4, offset = 0x4, fixed_abs, tag = 'smem constant byte address 0x4 - core index']
  #allocation1 [shape = 'u32[144,128]{1,0:T(1,128)}', space=vmem, size = 0x12000, scoped, tag = 'internal scratch']
  %s0 = inlined_call_operand.hbm [shape: f32[8,256], index: 0, kind: input, shape index: {}]
  %s1 = inlined_call_operand.hbm [shape: f32[8,256], index: 1, kind: output, shape index: {}]
  %s2 = sld [smem:[#allocation0]]
  $region18: #{tpu_custom_call.1} parent=0
    _
  %s4 = ssub.s32 1, %s2
  %s5 = scalar_select 0, %s4, %s2
  $region1: #{tpu_custom_call.1} parent=0
    #allocation2 [shape = 'u8[8192]{0}', space=vmem, size = 0x2000, scoped, tag = 'input window, operand 0, single buffered']
    #allocation3 [shape = 's32[1]{0}', space=sflag, size = 0x4, scoped, tag = 'scoped memory for tpu_custom_call.1']
    #allocation4 [shape = 's32[1]{0}', space=sflag, size = 0x4, scoped, tag = 'scoped memory for tpu_custom_call.1']
    #allocation5 [shape = 'u8[8192]{0}', space=vmem, size = 0x2000, scoped, tag = 'output window, operand 0, single buffered']
    %6 = vsyncpa [#allocation3], 0
    %7 = vsyncpa [#allocation4], 0
    // Predicated region
    $region2: #{tpu_custom_call.1} parent=1 // pred_check
      _
    $region3: #{tpu_custom_call.1} parent=1 // pred_check_branch
      %9 = sbr.rel (0) target = $region5
    $region4: #{tpu_custom_call.1} parent=1 // pred_region
      %s11 = ssub.s32 256, 256
      %12 = vsyncadd [#allocation3], %s11
      %s14 = sshll.u32 [#allocation2], 4
      %s15 = int_to_ptr.vmem [resolvable:$true] %s14
      %17 = dma.hbm_to_vmem [thread:$0]  %s0, 256, %s15, [#allocation3]
    $region5: #{tpu_custom_call.1} parent=1 // pred_fallthru
      _
    // Predicated region
    $region6: #{tpu_custom_call.1} parent=1 // pred_check
      _
    $region7: #{tpu_custom_call.1} parent=1 // pred_check_branch
      %19 = sbr.rel (0) target = $region9
    $region8: #{tpu_custom_call.1} parent=1 // pred_region
      %20 = dma.done [#allocation3], 256
    $region9: #{tpu_custom_call.1} parent=1 // pred_fallthru
      _
    %v21 = vld [vmem:[#allocation2] sm:$0xff]
    %v22 = vld [vmem:[#allocation2 + $0x8] sm:$0xff]
    %v23 = vtanh.pop %v21
    %v24 = vtanh.pop %v22
    %25 = vst [vmem:[#allocation5] sm:$0xff] %v23
    %26 = vst [vmem:[#allocation5 + $0x8] sm:$0xff] %v24
    // Predicated region
    $region10: #{tpu_custom_call.1} parent=1 // pred_check
      _
    $region11: #{tpu_custom_call.1} parent=1 // pred_check_branch
      %28 = sbr.rel (0) target = $region13
    $region12: #{tpu_custom_call.1} parent=1 // pred_region
      %s30 = ssub.s32 256, 256
      %31 = vsyncadd [#allocation4], %s30
      %s33 = sshll.u32 [#allocation5], 4
      %s34 = int_to_ptr.vmem [resolvable:$true] %s33
      %36 = dma.vmem_to_hbm [thread:$0]  %s34, 256, %s1, [#allocation4]
    $region13: #{tpu_custom_call.1} parent=1 // pred_fallthru
      _
    // Predicated region
    $region14: #{tpu_custom_call.1} parent=1 // pred_check
      _
    $region15: #{tpu_custom_call.1} parent=1 // pred_check_branch
      %38 = sbr.rel (0) target = $region17
    $region16: #{tpu_custom_call.1} parent=1 // pred_region
      %39 = dma.done [#allocation4], 256
    $region17: #{tpu_custom_call.1} parent=1 // pred_fallthru
      _
    %40 = vsyncpa [#allocation3], 1
    %41 = vsyncpa [#allocation4], 1

</llo_original>
